<compile_context>
chip_gen: v5e
topology: v5e:2x2
jax: 0.10.0
libtpu: 0.0.40
codegen_flags: <defaults>
</compile_context>

<pallas_src>
import math

import jax
import jax.numpy as jnp
import numpy as np
from jax.experimental import pallas as pl
from jax.experimental.pallas import tpu as pltpu


# ---------------------------------------------------------------------------
# Small helpers
# ---------------------------------------------------------------------------

def _rup(x, m):
    return -(-x // m) * m


def _sublane_mult(itemsize):
    # sublane packing multiple for the second-minor dim: 8 (f32), 16 (bf16)
    return max(8, 32 // int(itemsize))


def _tile_bytes(shape, itemsize):
    """Layout-aware VMEM bytes: last dim -> 128 lanes, 2nd-minor -> sublanes."""
    itemsize = int(itemsize)
    if len(shape) == 1:
        return _rup(shape[0] * itemsize, 512)
    lanes = _rup(shape[-1], 128)
    subl = _rup(shape[-2], _sublane_mult(itemsize))
    lead = 1
    for d in shape[:-2]:
        lead *= int(d)
    return lead * subl * lanes * itemsize


def _vmem_capacity_bytes():
    try:
        return int(pltpu.get_tpu_info().vmem_capacity_bytes)
    except Exception:
        return 128 * 1024 * 1024  # v5e/v6e physical VMEM fallback


# ---------------------------------------------------------------------------
# Fused kernel
# ---------------------------------------------------------------------------

def _make_cmlp_kernel(n_layers, use_scratch, couts, c_pad):
    """Fused kernel for `n_layers` Conv1x1+ReLU layers + width max-pool.

    Ref layout (per grid step i over row tiles of size TM):
      refs[0]              : x_ref   (TM, W, C0)      activations, compute dtype
      refs[1 + 2*l]        : w_ref_l (C_l, C_{l+1})   weight, compute dtype
      refs[2 + 2*l]        : b_ref_l (1, C_{l+1})     bias, f32
      refs[1 + 2*n_layers] : out_ref (TM, C_pad)      concatenated pooled
      refs[2 + 2*n_layers] : acc_ref (TM, C_pad) f32  scratch (deep nets only)
    """
    c_total = sum(couts)

    def kernel(*refs):
        x_ref = refs[0]
        out_ref = refs[1 + 2 * n_layers]
        acc_ref = refs[2 + 2 * n_layers] if use_scratch else None
        store_dtype = x_ref.dtype

        tm, w, _ = x_ref.shape
        x = x_ref[...]                                   # (TM, W, Cin)

        if use_scratch and c_pad > c_total:
            acc_ref[:, c_total:] = jnp.zeros((tm, c_pad - c_total), jnp.float32)

        pooled_parts = []
        off = 0
        for li in range(n_layers):
            w_ref = refs[1 + 2 * li]
            b_ref = refs[2 + 2 * li]
            cin, cout = w_ref.shape

            # 1x1 conv == 2-D matmul over channels (MXU, f32 accumulate).
            # NOTE: the (TM, W, C) <-> (TM*W, C) reshape is only free when W is
            # a multiple of 8 (16 for bf16 sublane packing).
            x2d = x.reshape(tm * w, cin)
            y = jnp.dot(x2d, w_ref[...], preferred_element_type=jnp.float32)
            # bias + ReLU in f32 (safe for bf16 storage even on v5e's f32 VPU).
            y = jnp.maximum(y + b_ref[...].astype(jnp.float32), 0.0)

            y3d = y.reshape(tm, w, cout)
            pooled = jnp.max(y3d, axis=1)                # (TM, Cout) f32

            if use_scratch:
                acc_ref[:, off:off + cout] = pooled      # bounded live set
                off += cout
            else:
                pooled_parts.append(pooled)

            if li + 1 < n_layers:
                # Feed the next layer's MXU in the compute dtype; never
                # written back to HBM.
                x = y3d.astype(store_dtype)

        if use_scratch:
            out_ref[...] = acc_ref[...].astype(out_ref.dtype)
        else:
            if c_pad > c_total:
                pooled_parts.append(
                    jnp.zeros((tm, c_pad - c_total), jnp.float32))
            # Single lane-dense (multiple-of-128) store of the whole result.
            out_ref[...] = jnp.concatenate(pooled_parts, axis=1).astype(
                out_ref.dtype)

    return kernel


# ---------------------------------------------------------------------------
# Tile-size selection (layout-aware, VMEM-budget driven)
# ---------------------------------------------------------------------------

def _vmem_estimate_bytes(tm, w, channels, in_bytes, out_bytes, c_pad):
    c0 = channels[0]
    couts = channels[1:]
    est = 0
    # double-buffered input tile (TM, W, C0) in compute dtype
    est += 2 * _tile_bytes((tm, w, c0), in_bytes)
    # double-buffered output tile (TM, C_pad)
    est += 2 * _tile_bytes((tm, c_pad), out_bytes)
    # weights (single-buffered via pl.Buffered(1)) + f32 biases
    for i in range(len(couts)):
        est += _tile_bytes((channels[i], channels[i + 1]), in_bytes)
        est += _tile_bytes((1, channels[i + 1]), 4)
    # live activations: f32 matmul result (largest Cout) + compute-dtype input
    est += _tile_bytes((tm * w, max(couts)), 4)
    est += _tile_bytes((tm, w, max(channels[:-1])), in_bytes)
    # live pooled parts / scratch accumulator (f32)
    est += _tile_bytes((tm, c_pad), 4)
    return est


def _choose_tm(w, channels, in_bytes, out_bytes, c_pad, tm_target,
               budget_bytes, sub):
    """Largest power-of-two-ish row tile (>= sublane multiple) whose
    layout-aware VMEM estimate fits the generation-aware budget."""
    tm = max(sub, tm_target)
    while tm > sub and _vmem_estimate_bytes(
            tm, w, channels, in_bytes, out_bytes, c_pad) > budget_bytes:
        tm = max(sub, tm // 2)
    return tm


# ---------------------------------------------------------------------------
# Wrapper
# ---------------------------------------------------------------------------

def cmlp_forward(x_nchw, params, *, compute_dtype=jnp.bfloat16, out_dtype=None,
                 tm_target=1024, channels_last=False):
    """x_nchw: (B, C0, H, W). Returns (B, sum(Cout_i), H, 1) like the torch
    module (or (B, H, sum(Cout_i)) if channels_last=True).

    compute_dtype: MXU-input / on-chip storage dtype.  bf16 (default) is the
      fast path on ALL generations (v5e/v6e/v7x MXUs are bf16-native);
      accumulation, bias+ReLU and the max reduction are always f32.
    out_dtype: dtype of the pooled output written to HBM (default: x dtype;
      pass jnp.bfloat16 to halve the writeback for large sum(Cout)).
    """
    B, C0, H, W = (int(d) for d in x_nchw.shape)
    n_layers = len(params)
    couts = [int(w.shape[1]) for (w, _) in params]
    channels = [C0] + couts
    c_total = sum(couts)
    c_pad = _rup(c_total, 128)                 # lane-dense output channel dim

    out_dtype = x_nchw.dtype if out_dtype is None else out_dtype
    in_bytes = jnp.dtype(compute_dtype).itemsize
    out_bytes = jnp.dtype(out_dtype).itemsize

    # NCHW -> channels-last rows (M, W, C0), M = B*H.  Cast FIRST so the XLA
    # transpose moves bf16 bytes, not f32.
    M = B * H
    x = jnp.transpose(x_nchw.astype(compute_dtype),
                      (0, 2, 3, 1)).reshape(M, W, C0)

    # Generation-aware VMEM budget (~0.6x physical capacity).
    cap = _vmem_capacity_bytes()
    budget = int(0.6 * cap)
    sub = _sublane_mult(out_bytes)             # tm is 2nd-minor of the output
    tm = _choose_tm(W, channels, in_bytes, out_bytes, c_pad, tm_target,
                    budget, sub)

    # Clamp to the (padded) problem size and keep >=2 grid steps where possible
    # so ("parallel",) can shard across v7x's 2 TensorCores.
    m_align = _rup(M, sub)
    tm = min(tm, m_align)
    if m_align >= 2 * sub:
        tm = min(tm, _rup(m_align // 2, sub))
    tm = max(tm, sub)
    m_pad = _rup(M, tm)
    if m_pad != M:
        x = jnp.pad(x, ((0, m_pad - M), (0, 0), (0, 0)))

    flat_args = [x]
    # NOTE: raise the input block to pipeline_mode=pl.Buffered(3) if profiling
    # ever shows exposed input DMA on small-channel, HBM-bound configs.
    in_specs = [pl.BlockSpec((tm, W, C0), lambda i: (i, 0, 0))]
    for (w, b) in params:
        cin, cout = int(w.shape[0]), int(w.shape[1])
        flat_args.append(w.astype(compute_dtype))
        flat_args.append(b.reshape(1, cout).astype(jnp.float32))
        # Constant index_map => resident; single-buffer to save VMEM.
        in_specs.append(pl.BlockSpec((cin, cout), lambda i: (0, 0),
                                     pipeline_mode=pl.Buffered(1)))
        in_specs.append(pl.BlockSpec((1, cout), lambda i: (0, 0),
                                     pipeline_mode=pl.Buffered(1)))

    use_scratch = (n_layers >= 4) or (c_total >= 1024)
    scratch_shapes = ([pltpu.VMEM((tm, c_pad), jnp.float32)]
                      if use_scratch else [])

    est = _vmem_estimate_bytes(tm, W, channels, in_bytes, out_bytes, c_pad)
    vmem_limit = int(min(int(0.85 * cap),
                         max(2 * est, 32 * 1024 * 1024)))

    pooled = pl.pallas_call(
        _make_cmlp_kernel(n_layers, use_scratch, couts, c_pad),
        out_shape=jax.ShapeDtypeStruct((m_pad, c_pad), out_dtype),
        grid=(m_pad // tm,),
        in_specs=in_specs,
        out_specs=pl.BlockSpec((tm, c_pad), lambda i: (i, 0)),
        scratch_shapes=scratch_shapes,
        compiler_params=pltpu.CompilerParams(
            dimension_semantics=("parallel",),   # megacore-shardable on v7x
            vmem_limit_bytes=vmem_limit,
        ),
    )(*flat_args)

    pooled = pooled[:M, :c_total]                       # (B*H, C_total)
    if channels_last:
        return pooled.reshape(B, H, c_total)            # (B, H, C_total)
    # Torch-parity layout (B, C_total, H, 1): one post-kernel transpose.
    return pooled.reshape(B, H, c_total).transpose(0, 2, 1)[..., None]


# ---------------------------------------------------------------------------
# Params + pure-JAX reference
# ---------------------------------------------------------------------------

def init_cmlp_params(args, key):
    """Deterministic params matching CMLP.__init__ (bn=False => bias=True, 0-init;
    conv weight: kaiming_normal_ on (Cout, Cin, 1, 1) => std = sqrt(2 / Cin))."""
    params = []
    for i in range(len(args) - 1):
        cin, cout = args[i], args[i + 1]
        key, sub = jax.random.split(key)
        std = math.sqrt(2.0 / cin)  # fan_in = cin * 1 * 1, gain = sqrt(2)
        w = std * jax.random.normal(sub, (cin, cout), dtype=jnp.float32)
        b = jnp.zeros((cout,), dtype=jnp.float32)
        params.append((w, b))
    return params


def _reference_forward(x_nchw, params):
    """Pure-JAX f32 reference of the same math (for a sanity check)."""
    x = jnp.transpose(x_nchw, (0, 2, 3, 1))  # (B, H, W, C)
    outs = []
    for (w, b) in params:
        x = jnp.maximum(jnp.einsum("bhwc,cd->bhwd", x, w) + b, 0.0)
        p = jnp.max(x, axis=2)  # (B, H, Cout)
        outs.append(jnp.transpose(p, (0, 2, 1))[..., None])
    return jnp.concatenate(outs, axis=1)


# ---------------------------------------------------------------------------
# Self-test
# ---------------------------------------------------------------------------

if __name__ == "__main__":
    key = jax.random.PRNGKey(0)
    B, C0, H, W = 2, 4, 16, 16

    key, xkey = jax.random.split(key)
    x = jax.random.normal(xkey, (B, C0, H, W), dtype=jnp.float32)

    # --- Shallow net: CMLP([4, 32, 64]) -----------------------------------
    args = [C0, 32, 64]
    key, pkey = jax.random.split(key)
    params = init_cmlp_params(args, pkey)
    ref = _reference_forward(x, params)
    expected_shape = (B, sum(args[1:]), H, 1)

    # Default bf16 fast path (f32 accumulate; loose tolerance).
    out_bf16 = jax.block_until_ready(cmlp_forward(x, params))
    assert out_bf16.shape == expected_shape, out_bf16.shape
    np.testing.assert_allclose(np.asarray(out_bf16), np.asarray(ref),
                               rtol=5e-2, atol=1e-1)

    # f32 compute path (tight tolerance).
    out_f32 = jax.block_until_ready(
        cmlp_forward(x, params, compute_dtype=jnp.float32))
    assert out_f32.shape == expected_shape, out_f32.shape
    np.testing.assert_allclose(np.asarray(out_f32), np.asarray(ref),
                               rtol=1e-5, atol=1e-5)

    # --- Deep net: exercises the VMEM scratch-accumulator path ------------
    args2 = [C0, 16, 32, 32, 48]
    key, pkey2 = jax.random.split(key)
    params2 = init_cmlp_params(args2, pkey2)
    ref2 = _reference_forward(x, params2)
    expected_shape2 = (B, sum(args2[1:]), H, 1)

    out_deep = jax.block_until_ready(
        cmlp_forward(x, params2, compute_dtype=jnp.float32))
    assert out_deep.shape == expected_shape2, out_deep.shape
    np.testing.assert_allclose(np.asarray(out_deep), np.asarray(ref2),
                               rtol=1e-5, atol=1e-5)

    # channels_last output layout (skips the trailing NCHW transpose).
    out_cl = jax.block_until_ready(
        cmlp_forward(x, params2, compute_dtype=jnp.float32,
                     channels_last=True))
    assert out_cl.shape == (B, H, sum(args2[1:])), out_cl.shape
    np.testing.assert_allclose(
        np.asarray(out_cl.transpose(0, 2, 1)[..., None]), np.asarray(ref2),
        rtol=1e-5, atol=1e-5)

    print("KERNEL_OK")
</pallas_src>

<mosaic_0001>
module attributes {stable_mosaic.version = 11 : i64} {
  func.func @kernel(%arg0: i32, %arg1: memref<16x16x4xbf16, #tpu.memory_space<vmem>>, %arg2: memref<4x32xbf16, #tpu.memory_space<vmem>>, %arg3: memref<1x32xf32, #tpu.memory_space<vmem>>, %arg4: memref<32x64xbf16, #tpu.memory_space<vmem>>, %arg5: memref<1x64xf32, #tpu.memory_space<vmem>>, %arg6: memref<16x128xf32, #tpu.memory_space<vmem>>) attributes {dimension_semantics = [#tpu.dimension_semantics<parallel>], iteration_bounds = array<i64: 2>, scalar_prefetch = 0 : i64, scratch_operands = 0 : i64, tpu.core_type = #tpu.core_type<tc>, window_params = [{transform_indices = @transform_0, window_bounds = array<i64: 16, 16, 4>}, {pipeline_mode = #tpu.pipeline_mode<synchronous>, transform_indices = @transform_1, window_bounds = array<i64: 4, 32>}, {pipeline_mode = #tpu.pipeline_mode<synchronous>, transform_indices = @transform_2, window_bounds = array<i64: 1, 32>}, {pipeline_mode = #tpu.pipeline_mode<synchronous>, transform_indices = @transform_3, window_bounds = array<i64: 32, 64>}, {pipeline_mode = #tpu.pipeline_mode<synchronous>, transform_indices = @transform_4, window_bounds = array<i64: 1, 64>}, {transform_indices = @transform_5, window_bounds = array<i64: 16, 128>}]} {
    %c0 = arith.constant 0 : index
    %c0_0 = arith.constant 0 : index
    %c0_1 = arith.constant 0 : index
    %0 = vector.load %arg1[%c0, %c0_0, %c0_1] : memref<16x16x4xbf16, #tpu.memory_space<vmem>>, vector<16x16x4xbf16>
    %1 = vector.shape_cast %0 : vector<16x16x4xbf16> to vector<256x4xbf16>
    %c0_2 = arith.constant 0 : index
    %c0_3 = arith.constant 0 : index
    %2 = vector.load %arg2[%c0_2, %c0_3] : memref<4x32xbf16, #tpu.memory_space<vmem>>, vector<4x32xbf16>
    %cst = arith.constant dense<0.000000e+00> : vector<256x32xf32>
    %3 = tpu.matmul %1, %2, %cst {dimension_numbers = #tpu.dot_dimension_numbers<[1], [0], [0], [1], [0, 0, 1, 1], [], []>} : vector<256x4xbf16>, vector<4x32xbf16>, vector<256x32xf32> -> vector<256x32xf32>
    %c0_4 = arith.constant 0 : index
    %c0_5 = arith.constant 0 : index
    %4 = vector.load %arg3[%c0_4, %c0_5] : memref<1x32xf32, #tpu.memory_space<vmem>>, vector<1x32xf32>
    %5 = vector.broadcast %4 : vector<1x32xf32> to vector<256x32xf32>
    %6 = arith.addf %3, %5 : vector<256x32xf32>
    %cst_6 = arith.constant 0.000000e+00 : f32
    %7 = vector.broadcast %cst_6 : f32 to vector<256x32xf32>
    %8 = arith.maximumf %6, %7 : vector<256x32xf32>
    %9 = vector.shape_cast %8 : vector<256x32xf32> to vector<16x16x32xf32>
    %cst_7 = arith.constant dense<0xFF800000> : vector<16x32xf32>
    %10 = vector.multi_reduction <maximumf>, %9, %cst_7 [1] : vector<16x16x32xf32> to vector<16x32xf32>
    %11 = arith.truncf %9 : vector<16x16x32xf32> to vector<16x16x32xbf16>
    %12 = vector.shape_cast %11 : vector<16x16x32xbf16> to vector<256x32xbf16>
    %c0_8 = arith.constant 0 : index
    %c0_9 = arith.constant 0 : index
    %13 = vector.load %arg4[%c0_8, %c0_9] : memref<32x64xbf16, #tpu.memory_space<vmem>>, vector<32x64xbf16>
    %cst_10 = arith.constant dense<0.000000e+00> : vector<256x64xf32>
    %14 = tpu.matmul %12, %13, %cst_10 {dimension_numbers = #tpu.dot_dimension_numbers<[1], [0], [0], [1], [0, 0, 1, 1], [], []>} : vector<256x32xbf16>, vector<32x64xbf16>, vector<256x64xf32> -> vector<256x64xf32>
    %c0_11 = arith.constant 0 : index
    %c0_12 = arith.constant 0 : index
    %15 = vector.load %arg5[%c0_11, %c0_12] : memref<1x64xf32, #tpu.memory_space<vmem>>, vector<1x64xf32>
    %16 = vector.broadcast %15 : vector<1x64xf32> to vector<256x64xf32>
    %17 = arith.addf %14, %16 : vector<256x64xf32>
    %cst_13 = arith.constant 0.000000e+00 : f32
    %18 = vector.broadcast %cst_13 : f32 to vector<256x64xf32>
    %19 = arith.maximumf %17, %18 : vector<256x64xf32>
    %20 = vector.shape_cast %19 : vector<256x64xf32> to vector<16x16x64xf32>
    %cst_14 = arith.constant dense<0xFF800000> : vector<16x64xf32>
    %21 = vector.multi_reduction <maximumf>, %20, %cst_14 [1] : vector<16x16x64xf32> to vector<16x64xf32>
    %cst_15 = arith.constant 0.000000e+00 : f32
    %22 = vector.broadcast %cst_15 : f32 to vector<16x32xf32>
    %23 = tpu.concatenate %10, %21, %22 in 1 : vector<16x32xf32>, vector<16x64xf32>, vector<16x32xf32> -> vector<16x128xf32>
    %c0_16 = arith.constant 0 : index
    %c0_17 = arith.constant 0 : index
    %24 = vector.load %arg6[%c0_16, %c0_17] : memref<16x128xf32, #tpu.memory_space<vmem>>, vector<16x128xf32>
    tpu.vector_store %arg6[%c0_16, %c0_17], %23 {strides = array<i32>} : memref<16x128xf32, #tpu.memory_space<vmem>>, vector<16x128xf32>,
    return
  }
  func.func @transform_0(%arg0: i32) -> (i32, i32, i32) {
    %c0_i32 = arith.constant 0 : i32
    %c0_i32_0 = arith.constant 0 : i32
    %c0_i32_1 = arith.constant 0 : i32
    return %arg0, %c0_i32, %c0_i32_0 : i32, i32, i32
  }
  func.func @transform_1(%arg0: i32) -> (i32, i32) {
    %c0_i32 = arith.constant 0 : i32
    %c0_i32_0 = arith.constant 0 : i32
    %c0_i32_1 = arith.constant 0 : i32
    return %c0_i32, %c0_i32_0 : i32, i32
  }
  func.func @transform_2(%arg0: i32) -> (i32, i32) {
    %c0_i32 = arith.constant 0 : i32
    %c0_i32_0 = arith.constant 0 : i32
    %c0_i32_1 = arith.constant 0 : i32
    return %c0_i32, %c0_i32_0 : i32, i32
  }
  func.func @transform_3(%arg0: i32) -> (i32, i32) {
    %c0_i32 = arith.constant 0 : i32
    %c0_i32_0 = arith.constant 0 : i32
    %c0_i32_1 = arith.constant 0 : i32
    return %c0_i32, %c0_i32_0 : i32, i32
  }
  func.func @transform_4(%arg0: i32) -> (i32, i32) {
    %c0_i32 = arith.constant 0 : i32
    %c0_i32_0 = arith.constant 0 : i32
    %c0_i32_1 = arith.constant 0 : i32
    return %c0_i32, %c0_i32_0 : i32, i32
  }
  func.func @transform_5(%arg0: i32) -> (i32, i32) {
    %c0_i32 = arith.constant 0 : i32
    %c0_i32_0 = arith.constant 0 : i32
    return %arg0, %c0_i32 : i32, i32
  }
}

</mosaic_0001>

<llo_original>
// kernel: tpu_custom_call.1
$region0: #{tpu_custom_call.1}
  #allocation0 [shape = 'u32[]', space=smem, size = 0x4, offset = 0x4, fixed_abs, tag = 'smem constant byte address 0x4 - core index']
  #allocation1 [shape = 'u32[72,128]{1,0:T(1,128)}', space=vmem, size = 0x9000, scoped, tag = 'internal scratch']
  %s0 = inlined_call_operand.vmem [shape: bf16[32,16,4], index: 0, kind: input, shape index: {}]
  %s1 = inlined_call_operand.vmem [shape: bf16[4,32], index: 1, kind: input, shape index: {}]
  %s2 = inlined_call_operand.vmem [shape: f32[1,32], index: 2, kind: input, shape index: {}]
  %s3 = inlined_call_operand.vmem [shape: bf16[32,64], index: 3, kind: input, shape index: {}]
  %s4 = inlined_call_operand.vmem [shape: f32[1,64], index: 4, kind: input, shape index: {}]
  %s5 = inlined_call_operand.hbm [shape: f32[32,128], index: 5, kind: output, shape index: {}]
  %s6 = sld [smem:[#allocation0]]
  $region53: #{tpu_custom_call.1} parent=0
    _
  %s8 = ssub.s32 1, %s6
  %s9 = scalar_select 0, %s8, %s6
  $region1: #{tpu_custom_call.1} parent=0
    #allocation2 [shape = 'u8[16384]{0}', space=vmem, size = 0x4000, scoped, tag = 'output window, operand 0']
    #allocation3 [shape = 's32[2]{0}', space=sflag, size = 0x8, scoped, tag = 'scoped memory for tpu_custom_call.1']
    %10 = vsyncpa [#allocation3], 0
    %s11 = scalar_lea.sflag [#allocation3], 1
    %12 = vsyncpa %s11, 0
    loop: start=0, step=1, limit=4
    $region2: #{tpu_custom_call.1} parent=1 // loop_pre_header
      _
    $region3: #{tpu_custom_call.1} parent=1 // loop_header
      %s14 = sphi 0, %s18
      %p15 = scmp.ge.s32.totalorder %s14, 4
      %s24 = sphi 0, %s26
      %s27 = sphi 0, %s24
      %s28 = sphi 0, %s27
      %s44 = sphi 0, %s28
      %s48 = sphi 0, %s48
      %s50 = sphi 0, %s48
      %s51 = sphi 0, %s50
      %s65 = sphi 0, %s51
      %s69 = sphi 0, %s69
      %s71 = sphi 0, %s69
      %s72 = sphi 0, %s71
      %s86 = sphi 0, %s72
      %s90 = sphi 0, %s90
      %s92 = sphi 0, %s90
      %s93 = sphi 0, %s92
      %s107 = sphi 0, %s93
      %s111 = sphi 0, %s111
      %s113 = sphi 0, %s111
      %s114 = sphi 0, %s113
      %s128 = sphi 0, %s114
      %s134 = sphi 0, %s136
      %s137 = sphi 0, %s134
      %s138 = sphi 0, %s137
      %s154 = sphi 0, %s138
    $region4: #{tpu_custom_call.1} parent=1 // loop_header_branch
      %17 = sbr.rel (%p15) target = $region8
    $region5: #{tpu_custom_call.1} parent=1 // loop_body
      %s19 = ssub.s32 %s14, 1
      %s20 = ssub.s32 %s14, 2
      %s21 = sadd.s32 %s14, 1
      %s22 = ssub.s32 %s14, %s21
      %p23 = scmp.eq.s32.totalorder %s22, 0
      %s25 = sadd.s32 %s24, 1
      %s26 = scalar_select %p23, %s24, %s25
      %p29 = pneg %p23
      %p30 = scmp.eq.s32.totalorder %s14, 1
      %p31 = por %p29, %p30
      %p32 = scmp.ne.s32.totalorder %s24, %s27
      %p33 = scmp.eq.s32.totalorder %s14, 0
      %p34 = por %p32, %p33
      %p35 = scmp.ne.s32.totalorder %s24, %s27
      %p36 = scmp.eq.s32.totalorder %s19, 1
      %p37 = por %p35, %p36
      %p38 = scmp.ne.s32.totalorder %s27, %s28
      %p39 = scmp.eq.s32.totalorder %s19, 0
      %p40 = por %p38, %p39
      %p41 = scmp.ne.s32.totalorder %s27, %s28
      %p42 = scmp.eq.s32.totalorder %s20, 1
      %p43 = por %p41, %p42
      %p45 = scmp.ne.s32.totalorder %s28, %s44
      %p46 = scmp.eq.s32.totalorder %s20, 0
      %p47 = por %p45, %p46
      %s49 = sadd.s32 %s48, 1
      %p52 = scmp.eq.s32.totalorder %s14, 1
      %p53 = scmp.ne.s32.totalorder %s48, %s50
      %p54 = scmp.eq.s32.totalorder %s14, 0
      %p55 = por %p53, %p54
      %p56 = scmp.ne.s32.totalorder %s48, %s50
      %p57 = scmp.eq.s32.totalorder %s19, 1
      %p58 = por %p56, %p57
      %p59 = scmp.ne.s32.totalorder %s50, %s51
      %p60 = scmp.eq.s32.totalorder %s19, 0
      %p61 = por %p59, %p60
      %p62 = scmp.ne.s32.totalorder %s50, %s51
      %p63 = scmp.eq.s32.totalorder %s20, 1
      %p64 = por %p62, %p63
      %p66 = scmp.ne.s32.totalorder %s51, %s65
      %p67 = scmp.eq.s32.totalorder %s20, 0
      %p68 = por %p66, %p67
      %s70 = sadd.s32 %s69, 1
      %p73 = scmp.eq.s32.totalorder %s14, 1
      %p74 = scmp.ne.s32.totalorder %s69, %s71
      %p75 = scmp.eq.s32.totalorder %s14, 0
      %p76 = por %p74, %p75
      %p77 = scmp.ne.s32.totalorder %s69, %s71
      %p78 = scmp.eq.s32.totalorder %s19, 1
      %p79 = por %p77, %p78
      %p80 = scmp.ne.s32.totalorder %s71, %s72
      %p81 = scmp.eq.s32.totalorder %s19, 0
      %p82 = por %p80, %p81
      %p83 = scmp.ne.s32.totalorder %s71, %s72
      %p84 = scmp.eq.s32.totalorder %s20, 1
      %p85 = por %p83, %p84
      %p87 = scmp.ne.s32.totalorder %s72, %s86
      %p88 = scmp.eq.s32.totalorder %s20, 0
      %p89 = por %p87, %p88
      %s91 = sadd.s32 %s90, 1
      %p94 = scmp.eq.s32.totalorder %s14, 1
      %p95 = scmp.ne.s32.totalorder %s90, %s92
      %p96 = scmp.eq.s32.totalorder %s14, 0
      %p97 = por %p95, %p96
      %p98 = scmp.ne.s32.totalorder %s90, %s92
      %p99 = scmp.eq.s32.totalorder %s19, 1
      %p100 = por %p98, %p99
      %p101 = scmp.ne.s32.totalorder %s92, %s93
      %p102 = scmp.eq.s32.totalorder %s19, 0
      %p103 = por %p101, %p102
      %p104 = scmp.ne.s32.totalorder %s92, %s93
      %p105 = scmp.eq.s32.totalorder %s20, 1
      %p106 = por %p104, %p105
      %p108 = scmp.ne.s32.totalorder %s93, %s107
      %p109 = scmp.eq.s32.totalorder %s20, 0
      %p110 = por %p108, %p109
      %s112 = sadd.s32 %s111, 1
      %p115 = scmp.eq.s32.totalorder %s14, 1
      %p116 = scmp.ne.s32.totalorder %s111, %s113
      %p117 = scmp.eq.s32.totalorder %s14, 0
      %p118 = por %p116, %p117
      %p119 = scmp.ne.s32.totalorder %s111, %s113
      %p120 = scmp.eq.s32.totalorder %s19, 1
      %p121 = por %p119, %p120
      %p122 = scmp.ne.s32.totalorder %s113, %s114
      %p123 = scmp.eq.s32.totalorder %s19, 0
      %p124 = por %p122, %p123
      %p125 = scmp.ne.s32.totalorder %s113, %s114
      %p126 = scmp.eq.s32.totalorder %s20, 1
      %p127 = por %p125, %p126
      %p129 = scmp.ne.s32.totalorder %s114, %s128
      %p130 = scmp.eq.s32.totalorder %s20, 0
      %p131 = por %p129, %p130
      %s132 = ssub.s32 %s14, %s21
      %p133 = scmp.eq.s32.totalorder %s132, 0
      %s135 = sadd.s32 %s134, 1
      %s136 = scalar_select %p133, %s134, %s135
      %p139 = pneg %p133
      %p140 = scmp.eq.s32.totalorder %s14, 1
      %p141 = por %p139, %p140
      %p142 = scmp.ne.s32.totalorder %s134, %s137
      %p143 = scmp.eq.s32.totalorder %s14, 0
      %p144 = por %p142, %p143
      %p145 = scmp.ne.s32.totalorder %s134, %s137
      %p146 = scmp.eq.s32.totalorder %s19, 1
      %p147 = por %p145, %p146
      %p148 = scmp.ne.s32.totalorder %s137, %s138
      %p149 = scmp.eq.s32.totalorder %s19, 0
      %p150 = por %p148, %p149
      %p151 = scmp.ne.s32.totalorder %s137, %s138
      %p152 = scmp.eq.s32.totalorder %s20, 1
      %p153 = por %p151, %p152
      %p155 = scmp.ne.s32.totalorder %s138, %s154
      %p156 = scmp.eq.s32.totalorder %s20, 0
      %p157 = por %p155, %p156
      %p158 = scmp.le.s32.totalorder 1, %s14
      %p159 = scmp.lt.s32.totalorder %s14, 3
      %p160 = pnand %p158, %p159
      %p161 = pneg %p160
      // Predicated region
      $region9: #{tpu_custom_call.1} parent=5 // pred_check
        _
      $region10: #{tpu_custom_call.1} parent=5 // pred_check_branch
        %163 = sbr.rel (%p160) target = $region12
      $region11: #{tpu_custom_call.1} parent=5 // pred_region
        %s164 = ssub.s32 %s14, 1
        // Predicated region
        $region13: #{tpu_custom_call.1} parent=11 // pred_check
          %p165 = pneg %p61
        $region14: #{tpu_custom_call.1} parent=11 // pred_check_branch
          %167 = sbr.rel (%p165) target = $region16
        $region15: #{tpu_custom_call.1} parent=11 // pred_region
          _
        $region16: #{tpu_custom_call.1} parent=11 // pred_fallthru
          _
        // Predicated region
        $region17: #{tpu_custom_call.1} parent=11 // pred_check
          %p168 = pneg %p82
        $region18: #{tpu_custom_call.1} parent=11 // pred_check_branch
          %170 = sbr.rel (%p168) target = $region20
        $region19: #{tpu_custom_call.1} parent=11 // pred_region
          _
        $region20: #{tpu_custom_call.1} parent=11 // pred_fallthru
          _
        // Predicated region
        $region21: #{tpu_custom_call.1} parent=11 // pred_check
          %p171 = pneg %p103
        $region22: #{tpu_custom_call.1} parent=11 // pred_check_branch
          %173 = sbr.rel (%p171) target = $region24
        $region23: #{tpu_custom_call.1} parent=11 // pred_region
          _
        $region24: #{tpu_custom_call.1} parent=11 // pred_fallthru
          _
        // Predicated region
        $region25: #{tpu_custom_call.1} parent=11 // pred_check
          %p174 = pneg %p124
        $region26: #{tpu_custom_call.1} parent=11 // pred_check_branch
          %176 = sbr.rel (%p174) target = $region28
        $region27: #{tpu_custom_call.1} parent=11 // pred_region
          _
        $region28: #{tpu_custom_call.1} parent=11 // pred_fallthru
          _
      $region12: #{tpu_custom_call.1} parent=5 // pred_fallthru
        _
      %p177 = scmp.lt.s32.totalorder %s14, 2
      // Predicated region
      $region29: #{tpu_custom_call.1} parent=5 // pred_check
        %p178 = pneg %p177
      $region30: #{tpu_custom_call.1} parent=5 // pred_check_branch
        %180 = sbr.rel (%p178) target = $region32
      $region31: #{tpu_custom_call.1} parent=5 // pred_region
        // Predicated region
        $region33: #{tpu_custom_call.1} parent=31 // pred_check
          %p181 = pneg %p34
        $region34: #{tpu_custom_call.1} parent=31 // pred_check_branch
          %183 = sbr.rel (%p181) target = $region36
        $region35: #{tpu_custom_call.1} parent=31 // pred_region
          %s184 = smul.u32 16, %s14
          %p185 = scmp.lt.s32.totalorder %s184, 31
          %s186 = scalar_select %p185, %s184, 31
          %s187 = smul.addr %s186, 2
          %s188 = smul.addr %s187, 4
          %s189 = scalar_lea.vmem %s0, %s188
          %s190 = smul.u32 16, %s14
        $region36: #{tpu_custom_call.1} parent=31 // pred_fallthru
          _
      $region32: #{tpu_custom_call.1} parent=5 // pred_fallthru
        _
      %p191 = scmp.le.s32.totalorder 1, %s14
      %p192 = scmp.lt.s32.totalorder %s14, 3
      %p193 = pnand %p191, %p192
      %p194 = pneg %p193
      // Predicated region
      $region37: #{tpu_custom_call.1} parent=5 // pred_check
        _
      $region38: #{tpu_custom_call.1} parent=5 // pred_check_branch
        %196 = sbr.rel (%p193) target = $region40
      $region39: #{tpu_custom_call.1} parent=5 // pred_region
        %s197 = ssub.s32 %s14, 1
        %s198 = smul.u32 16, %s19
        %p199 = scmp.lt.s32.totalorder %s198, 31
        %s200 = scalar_select %p199, %s198, 31
        %s201 = smul.addr %s200, 2
        %s202 = smul.addr %s201, 4
        %s203 = scalar_lea.vmem %s0, %s202
        %p204 = pneg %p40
        %p205 = pneg %p37
        %p206 = pneg %p61
        %p207 = pneg %p58
        %p208 = pneg %p82
        %p209 = pneg %p79
        %p210 = pneg %p103
        %p211 = pneg %p100
        %p212 = pneg %p124
        %p213 = pneg %p121
        %p214 = pneg %p150
        %p215 = pneg %p147
        %s216 = sand.u32 %s137, 1
        %s217 = scalar_lea.sflag [#allocation3], %s216
        %s218 = sand.u32 %s137, 1
        %s219 = smul.addr %s218, 16
        %s220 = scalar_lea.vmem [#allocation2], %s219
        %s221 = smul.u32 16, %s19
        %p222 = scmp.lt.s32.totalorder %s221, 31
        %s223 = scalar_select %p222, %s221, 31
        %s224 = smul.addr %s223, 2
        %s225 = smul.addr %s224, 4
        %s226 = scalar_lea.vmem %s0, %s225
        %s227 = smul.u32 16, %s19
        %s228 = smul.u32 2, %s19
        %v230 = vld [vmem:[%s226] sm:$0xf]
        %v231 = vld [vmem:[%s226 + $0x4] sm:$0xf]
        %v232 = vld [vmem:[%s226 + $0x8] sm:$0xf]
        %v233 = vld [vmem:[%s226 + $0xc] sm:$0xf]
        %v234 = vld [vmem:[%s226 + $0x10] sm:$0xf]
        %v235 = vld [vmem:[%s226 + $0x14] sm:$0xf]
        %v236 = vld [vmem:[%s226 + $0x18] sm:$0xf]
        %v237 = vld [vmem:[%s226 + $0x1c] sm:$0xf]
        %v238 = vld [vmem:[%s226 + $0x20] sm:$0xf]
        %v239 = vld [vmem:[%s226 + $0x24] sm:$0xf]
        %v240 = vld [vmem:[%s226 + $0x28] sm:$0xf]
        %v241 = vld [vmem:[%s226 + $0x2c] sm:$0xf]
        %v242 = vld [vmem:[%s226 + $0x30] sm:$0xf]
        %v243 = vld [vmem:[%s226 + $0x34] sm:$0xf]
        %v244 = vld [vmem:[%s226 + $0x38] sm:$0xf]
        %v245 = vld [vmem:[%s226 + $0x3c] sm:$0xf]
        %v246 = vld [vmem:[%s226 + $0x40] sm:$0xf]
        %v247 = vld [vmem:[%s226 + $0x44] sm:$0xf]
        %v248 = vld [vmem:[%s226 + $0x48] sm:$0xf]
        %v249 = vld [vmem:[%s226 + $0x4c] sm:$0xf]
        %v250 = vld [vmem:[%s226 + $0x50] sm:$0xf]
        %v251 = vld [vmem:[%s226 + $0x54] sm:$0xf]
        %v252 = vld [vmem:[%s226 + $0x58] sm:$0xf]
        %v253 = vld [vmem:[%s226 + $0x5c] sm:$0xf]
        %v254 = vld [vmem:[%s226 + $0x60] sm:$0xf]
        %v255 = vld [vmem:[%s226 + $0x64] sm:$0xf]
        %v256 = vld [vmem:[%s226 + $0x68] sm:$0xf]
        %v257 = vld [vmem:[%s226 + $0x6c] sm:$0xf]
        %v258 = vld [vmem:[%s226 + $0x70] sm:$0xf]
        %v259 = vld [vmem:[%s226 + $0x74] sm:$0xf]
        %v260 = vld [vmem:[%s226 + $0x78] sm:$0xf]
        %v261 = vld [vmem:[%s226 + $0x7c] sm:$0xf]
        %v262 = vld [vmem:[%s1] sm:$0x3]
        %v263 = vld [vmem:[%s2] sm:$0x1]
        %v265 = vperm.slane %v263, 0
        %v299 = vunpack.c.l.b16 %v230
        %v300 = vunpack.c.l.b16 %v231
        %v301 = vunpack.c.l.b16 %v232
        %v302 = vunpack.c.l.b16 %v233
        %v303 = vunpack.c.l.b16 %v234
        %v304 = vunpack.c.l.b16 %v235
        %v305 = vunpack.c.l.b16 %v236
        %v306 = vunpack.c.l.b16 %v237
        %v307 = vunpack.c.l.b16 %v238
        %v308 = vunpack.c.l.b16 %v239
        %v309 = vunpack.c.l.b16 %v240
        %v310 = vunpack.c.l.b16 %v241
        %v311 = vunpack.c.l.b16 %v242
        %v312 = vunpack.c.l.b16 %v243
        %v313 = vunpack.c.l.b16 %v244
        %v314 = vunpack.c.l.b16 %v245
        %v315 = vunpack.c.l.b16 %v246
        %v316 = vunpack.c.l.b16 %v247
        %v317 = vunpack.c.l.b16 %v248
        %v318 = vunpack.c.l.b16 %v249
        %v319 = vunpack.c.l.b16 %v250
        %v320 = vunpack.c.l.b16 %v251
        %v321 = vunpack.c.l.b16 %v252
        %v322 = vunpack.c.l.b16 %v253
        %v323 = vunpack.c.l.b16 %v254
        %v324 = vunpack.c.l.b16 %v255
        %v325 = vunpack.c.l.b16 %v256
        %v326 = vunpack.c.l.b16 %v257
        %v327 = vunpack.c.l.b16 %v258
        %v328 = vunpack.c.l.b16 %v259
        %v329 = vunpack.c.l.b16 %v260
        %v330 = vunpack.c.l.b16 %v261
        %v331 = vpack.c.b16 %v300, %v299
        %v332 = vpack.c.b16 %v302, %v301
        %v333 = vpack.c.b16 %v304, %v303
        %v334 = vpack.c.b16 %v306, %v305
        %v335 = vpack.c.b16 %v308, %v307
        %v336 = vpack.c.b16 %v310, %v309
        %v337 = vpack.c.b16 %v312, %v311
        %v338 = vpack.c.b16 %v314, %v313
        %v339 = vpack.c.b16 %v316, %v315
        %v340 = vpack.c.b16 %v318, %v317
        %v341 = vpack.c.b16 %v320, %v319
        %v342 = vpack.c.b16 %v322, %v321
        %v343 = vpack.c.b16 %v324, %v323
        %v344 = vpack.c.b16 %v326, %v325
        %v345 = vpack.c.b16 %v328, %v327
        %v346 = vpack.c.b16 %v330, %v329
        %vm347 = vcmask 31744
        %v349 = vsel %vm347, %v331, 0
        %v352 = vsel %vm347, %v332, 0
        %v355 = vsel %vm347, %v333, 0
        %v358 = vsel %vm347, %v334, 0
        %v361 = vsel %vm347, %v335, 0
        %v364 = vsel %vm347, %v336, 0
        %v367 = vsel %vm347, %v337, 0
        %v370 = vsel %vm347, %v338, 0
        %v373 = vsel %vm347, %v339, 0
        %v376 = vsel %vm347, %v340, 0
        %v379 = vsel %vm347, %v341, 0
        %v382 = vsel %vm347, %v342, 0
        %v385 = vsel %vm347, %v343, 0
        %v388 = vsel %vm347, %v344, 0
        %v391 = vsel %vm347, %v345, 0
        %v394 = vsel %vm347, %v346, 0
        %vm396 = vcmask 1041408
        %v398 = vsel %vm396, %v262, 0
        %400 = vmatpush.bf16.msra.mxu0 0
        %401 = vmatpush.bf16.msra.mxu0 0
        %402 = vmatpush.bf16.msra.mxu0 0
        %403 = vmatpush.bf16.msra.mxu0 0
        %404 = vmatpush.bf16.msra.mxu0 0
        %405 = vmatpush.bf16.msra.mxu0 0
        %406 = vmatpush.bf16.msra.mxu0 0
        %407 = vmatpush.bf16.msra.mxu0 %v398
        %408 = vmatmul.bf16.gmra.mxu0 %v349
        %v409 = vpop.f32.mrf.mxu0
        %v410 = vadd.f32 %v265, %v409
        %v411 = vpop.f32.mrf.mxu0
        %v412 = vadd.f32 %v265, %v411
        %413 = vmatmul.bf16.gmra.mxu0 %v352
        %v414 = vpop.f32.mrf.mxu0
        %v415 = vadd.f32 %v265, %v414
        %v416 = vpop.f32.mrf.mxu0
        %v417 = vadd.f32 %v265, %v416
        %418 = vmatmul.bf16.gmra.mxu0 %v355
        %v419 = vpop.f32.mrf.mxu0
        %v420 = vadd.f32 %v265, %v419
        %v421 = vpop.f32.mrf.mxu0
        %v422 = vadd.f32 %v265, %v421
        %423 = vmatmul.bf16.gmra.mxu0 %v358
        %v424 = vpop.f32.mrf.mxu0
        %v425 = vadd.f32 %v265, %v424
        %v426 = vpop.f32.mrf.mxu0
        %v427 = vadd.f32 %v265, %v426
        %428 = vmatmul.bf16.gmra.mxu0 %v361
        %v429 = vpop.f32.mrf.mxu0
        %v430 = vadd.f32 %v265, %v429
        %v431 = vpop.f32.mrf.mxu0
        %v432 = vadd.f32 %v265, %v431
        %433 = vmatmul.bf16.gmra.mxu0 %v364
        %v434 = vpop.f32.mrf.mxu0
        %v435 = vadd.f32 %v265, %v434
        %v436 = vpop.f32.mrf.mxu0
        %v437 = vadd.f32 %v265, %v436
        %438 = vmatmul.bf16.gmra.mxu0 %v367
        %v439 = vpop.f32.mrf.mxu0
        %v440 = vadd.f32 %v265, %v439
        %v441 = vpop.f32.mrf.mxu0
        %v442 = vadd.f32 %v265, %v441
        %443 = vmatmul.bf16.gmra.mxu0 %v370
        %v444 = vpop.f32.mrf.mxu0
        %v445 = vadd.f32 %v265, %v444
        %v446 = vpop.f32.mrf.mxu0
        %v447 = vadd.f32 %v265, %v446
        %448 = vmatmul.bf16.gmra.mxu0 %v373
        %v449 = vpop.f32.mrf.mxu0
        %v450 = vadd.f32 %v265, %v449
        %v451 = vpop.f32.mrf.mxu0
        %v452 = vadd.f32 %v265, %v451
        %453 = vmatmul.bf16.gmra.mxu0 %v376
        %v454 = vpop.f32.mrf.mxu0
        %v455 = vadd.f32 %v265, %v454
        %v456 = vpop.f32.mrf.mxu0
        %v457 = vadd.f32 %v265, %v456
        %458 = vmatmul.bf16.gmra.mxu0 %v379
        %v459 = vpop.f32.mrf.mxu0
        %v460 = vadd.f32 %v265, %v459
        %v461 = vpop.f32.mrf.mxu0
        %v462 = vadd.f32 %v265, %v461
        %463 = vmatmul.bf16.gmra.mxu0 %v382
        %v464 = vpop.f32.mrf.mxu0
        %v465 = vadd.f32 %v265, %v464
        %v466 = vpop.f32.mrf.mxu0
        %v467 = vadd.f32 %v265, %v466
        %468 = vmatmul.bf16.gmra.mxu0 %v385
        %v469 = vpop.f32.mrf.mxu0
        %v470 = vadd.f32 %v265, %v469
        %v471 = vpop.f32.mrf.mxu0
        %v472 = vadd.f32 %v265, %v471
        %473 = vmatmul.bf16.gmra.mxu0 %v388
        %v474 = vpop.f32.mrf.mxu0
        %v475 = vadd.f32 %v265, %v474
        %v476 = vpop.f32.mrf.mxu0
        %v477 = vadd.f32 %v265, %v476
        %478 = vmatmul.bf16.gmra.mxu0 %v391
        %v479 = vpop.f32.mrf.mxu0
        %v480 = vadd.f32 %v265, %v479
        %v481 = vpop.f32.mrf.mxu0
        %v482 = vadd.f32 %v265, %v481
        %483 = vmatmul.bf16.gmra.mxu0 %v394
        %v484 = vpop.f32.mrf.mxu0
        %v485 = vadd.f32 %v265, %v484
        %v486 = vpop.f32.mrf.mxu0
        %v487 = vadd.f32 %v265, %v486
        %488 = vdwg.mxu0
        %v489 = vmax.f32 %v410, 0.0
        %v490 = vmax.f32 %v412, 0.0
        %v491 = vmax.f32 %v415, 0.0
        %v492 = vmax.f32 %v417, 0.0
        %v493 = vmax.f32 %v420, 0.0
        %v494 = vmax.f32 %v422, 0.0
        %v495 = vmax.f32 %v425, 0.0
        %v496 = vmax.f32 %v427, 0.0
        %v497 = vmax.f32 %v430, 0.0
        %v498 = vmax.f32 %v432, 0.0
        %v499 = vmax.f32 %v435, 0.0
        %v500 = vmax.f32 %v437, 0.0
        %v501 = vmax.f32 %v440, 0.0
        %v502 = vmax.f32 %v442, 0.0
        %v503 = vmax.f32 %v445, 0.0
        %v504 = vmax.f32 %v447, 0.0
        %v505 = vmax.f32 %v450, 0.0
        %v506 = vmax.f32 %v452, 0.0
        %v507 = vmax.f32 %v455, 0.0
        %v508 = vmax.f32 %v457, 0.0
        %v509 = vmax.f32 %v460, 0.0
        %v510 = vmax.f32 %v462, 0.0
        %v511 = vmax.f32 %v465, 0.0
        %v512 = vmax.f32 %v467, 0.0
        %v513 = vmax.f32 %v470, 0.0
        %v514 = vmax.f32 %v472, 0.0
        %v515 = vmax.f32 %v475, 0.0
        %v516 = vmax.f32 %v477, 0.0
        %v517 = vmax.f32 %v480, 0.0
        %v518 = vmax.f32 %v482, 0.0
        %v519 = vmax.f32 %v485, 0.0
        %v520 = vmax.f32 %v487, 0.0
        %vm521 = vcmask 261120
        %v522 = vsel %vm521, %v489, -inf
        %v523 = vsel %vm521, %v490, -inf
        %v524 = vmax.f32 %v522, %v523
        %v525 = vrot.slane %v524, 4
        %v526 = vmax.f32 %v524, %v525
        %v527 = vrot.slane %v526, 2
        %v528 = vmax.f32 %v526, %v527
        %v529 = vrot.slane %v528, 1
        %v530 = vmax.f32 %v528, %v529
        %v531 = vsel %vm521, %v491, -inf
        %v532 = vsel %vm521, %v492, -inf
        %v533 = vmax.f32 %v531, %v532
        %v534 = vrot.slane %v533, 4
        %v535 = vmax.f32 %v533, %v534
        %v536 = vrot.slane %v535, 2
        %v537 = vmax.f32 %v535, %v536
        %v538 = vrot.slane %v537, 1
        %v539 = vmax.f32 %v537, %v538
        %v540 = vsel %vm521, %v493, -inf
        %v541 = vsel %vm521, %v494, -inf
        %v542 = vmax.f32 %v540, %v541
        %v543 = vrot.slane %v542, 4
        %v544 = vmax.f32 %v542, %v543
        %v545 = vrot.slane %v544, 2
        %v546 = vmax.f32 %v544, %v545
        %v547 = vrot.slane %v546, 1
        %v548 = vmax.f32 %v546, %v547
        %v549 = vsel %vm521, %v495, -inf
        %v550 = vsel %vm521, %v496, -inf
        %v551 = vmax.f32 %v549, %v550
        %v552 = vrot.slane %v551, 4
        %v553 = vmax.f32 %v551, %v552
        %v554 = vrot.slane %v553, 2
        %v555 = vmax.f32 %v553, %v554
        %v556 = vrot.slane %v555, 1
        %v557 = vmax.f32 %v555, %v556
        %v558 = vsel %vm521, %v497, -inf
        %v559 = vsel %vm521, %v498, -inf
        %v560 = vmax.f32 %v558, %v559
        %v561 = vrot.slane %v560, 4
        %v562 = vmax.f32 %v560, %v561
        %v563 = vrot.slane %v562, 2
        %v564 = vmax.f32 %v562, %v563
        %v565 = vrot.slane %v564, 1
        %v566 = vmax.f32 %v564, %v565
        %v567 = vsel %vm521, %v499, -inf
        %v568 = vsel %vm521, %v500, -inf
        %v569 = vmax.f32 %v567, %v568
        %v570 = vrot.slane %v569, 4
        %v571 = vmax.f32 %v569, %v570
        %v572 = vrot.slane %v571, 2
        %v573 = vmax.f32 %v571, %v572
        %v574 = vrot.slane %v573, 1
        %v575 = vmax.f32 %v573, %v574
        %v576 = vsel %vm521, %v501, -inf
        %v577 = vsel %vm521, %v502, -inf
        %v578 = vmax.f32 %v576, %v577
        %v579 = vrot.slane %v578, 4
        %v580 = vmax.f32 %v578, %v579
        %v581 = vrot.slane %v580, 2
        %v582 = vmax.f32 %v580, %v581
        %v583 = vrot.slane %v582, 1
        %v584 = vmax.f32 %v582, %v583
        %v585 = vsel %vm521, %v503, -inf
        %v586 = vsel %vm521, %v504, -inf
        %v587 = vmax.f32 %v585, %v586
        %v588 = vrot.slane %v587, 4
        %v589 = vmax.f32 %v587, %v588
        %v590 = vrot.slane %v589, 2
        %v591 = vmax.f32 %v589, %v590
        %v592 = vrot.slane %v591, 1
        %v593 = vmax.f32 %v591, %v592
        %v594 = vsel %vm521, %v505, -inf
        %v595 = vsel %vm521, %v506, -inf
        %v596 = vmax.f32 %v594, %v595
        %v597 = vrot.slane %v596, 4
        %v598 = vmax.f32 %v596, %v597
        %v599 = vrot.slane %v598, 2
        %v600 = vmax.f32 %v598, %v599
        %v601 = vrot.slane %v600, 1
        %v602 = vmax.f32 %v600, %v601
        %v603 = vsel %vm521, %v507, -inf
        %v604 = vsel %vm521, %v508, -inf
        %v605 = vmax.f32 %v603, %v604
        %v606 = vrot.slane %v605, 4
        %v607 = vmax.f32 %v605, %v606
        %v608 = vrot.slane %v607, 2
        %v609 = vmax.f32 %v607, %v608
        %v610 = vrot.slane %v609, 1
        %v611 = vmax.f32 %v609, %v610
        %v612 = vsel %vm521, %v509, -inf
        %v613 = vsel %vm521, %v510, -inf
        %v614 = vmax.f32 %v612, %v613
        %v615 = vrot.slane %v614, 4
        %v616 = vmax.f32 %v614, %v615
        %v617 = vrot.slane %v616, 2
        %v618 = vmax.f32 %v616, %v617
        %v619 = vrot.slane %v618, 1
        %v620 = vmax.f32 %v618, %v619
        %v621 = vsel %vm521, %v511, -inf
        %v622 = vsel %vm521, %v512, -inf
        %v623 = vmax.f32 %v621, %v622
        %v624 = vrot.slane %v623, 4
        %v625 = vmax.f32 %v623, %v624
        %v626 = vrot.slane %v625, 2
        %v627 = vmax.f32 %v625, %v626
        %v628 = vrot.slane %v627, 1
        %v629 = vmax.f32 %v627, %v628
        %v630 = vsel %vm521, %v513, -inf
        %v631 = vsel %vm521, %v514, -inf
        %v632 = vmax.f32 %v630, %v631
        %v633 = vrot.slane %v632, 4
        %v634 = vmax.f32 %v632, %v633
        %v635 = vrot.slane %v634, 2
        %v636 = vmax.f32 %v634, %v635
        %v637 = vrot.slane %v636, 1
        %v638 = vmax.f32 %v636, %v637
        %v639 = vsel %vm521, %v515, -inf
        %v640 = vsel %vm521, %v516, -inf
        %v641 = vmax.f32 %v639, %v640
        %v642 = vrot.slane %v641, 4
        %v643 = vmax.f32 %v641, %v642
        %v644 = vrot.slane %v643, 2
        %v645 = vmax.f32 %v643, %v644
        %v646 = vrot.slane %v645, 1
        %v647 = vmax.f32 %v645, %v646
        %v648 = vsel %vm521, %v517, -inf
        %v649 = vsel %vm521, %v518, -inf
        %v650 = vmax.f32 %v648, %v649
        %v651 = vrot.slane %v650, 4
        %v652 = vmax.f32 %v650, %v651
        %v653 = vrot.slane %v652, 2
        %v654 = vmax.f32 %v652, %v653
        %v655 = vrot.slane %v654, 1
        %v656 = vmax.f32 %v654, %v655
        %v657 = vsel %vm521, %v519, -inf
        %v658 = vsel %vm521, %v520, -inf
        %v659 = vmax.f32 %v657, %v658
        %v660 = vrot.slane %v659, 4
        %v661 = vmax.f32 %v659, %v660
        %v662 = vrot.slane %v661, 2
        %v663 = vmax.f32 %v661, %v662
        %v664 = vrot.slane %v663, 1
        %v665 = vmax.f32 %v663, %v664
        %v666 = vpack.c.bf16 %v489, %v489
        %v667 = vpack.c.bf16 %v490, %v490
        %v668 = vpack.c.bf16 %v491, %v491
        %v669 = vpack.c.bf16 %v492, %v492
        %v670 = vpack.c.bf16 %v493, %v493
        %v671 = vpack.c.bf16 %v494, %v494
        %v672 = vpack.c.bf16 %v495, %v495
        %v673 = vpack.c.bf16 %v496, %v496
        %v674 = vpack.c.bf16 %v497, %v497
        %v675 = vpack.c.bf16 %v498, %v498
        %v676 = vpack.c.bf16 %v499, %v499
        %v677 = vpack.c.bf16 %v500, %v500
        %v678 = vpack.c.bf16 %v501, %v501
        %v679 = vpack.c.bf16 %v502, %v502
        %v680 = vpack.c.bf16 %v503, %v503
        %v681 = vpack.c.bf16 %v504, %v504
        %v682 = vpack.c.bf16 %v505, %v505
        %v683 = vpack.c.bf16 %v506, %v506
        %v684 = vpack.c.bf16 %v507, %v507
        %v685 = vpack.c.bf16 %v508, %v508
        %v686 = vpack.c.bf16 %v509, %v509
        %v687 = vpack.c.bf16 %v510, %v510
        %v688 = vpack.c.bf16 %v511, %v511
        %v689 = vpack.c.bf16 %v512, %v512
        %v690 = vpack.c.bf16 %v513, %v513
        %v691 = vpack.c.bf16 %v514, %v514
        %v692 = vpack.c.bf16 %v515, %v515
        %v693 = vpack.c.bf16 %v516, %v516
        %v694 = vpack.c.bf16 %v517, %v517
        %v695 = vpack.c.bf16 %v518, %v518
        %v696 = vpack.c.bf16 %v519, %v519
        %v697 = vpack.c.bf16 %v520, %v520
        %v698 = vld [vmem:[%s3] sm:$0xf]
        %v699 = vld [vmem:[%s3 + $0x4] sm:$0xf]
        %v700 = vld [vmem:[%s3 + $0x8] sm:$0xf]
        %v701 = vld [vmem:[%s3 + $0xc] sm:$0xf]
        %v702 = vld [vmem:[%s4] sm:$0x1]
        %v704 = vperm.slane %v702, 0
        %v738 = vunpack.c.l.b16 %v666
        %v739 = vunpack.c.l.b16 %v667
        %v740 = vunpack.c.l.b16 %v668
        %v741 = vunpack.c.l.b16 %v669
        %v742 = vunpack.c.l.b16 %v670
        %v743 = vunpack.c.l.b16 %v671
        %v744 = vunpack.c.l.b16 %v672
        %v745 = vunpack.c.l.b16 %v673
        %v746 = vunpack.c.l.b16 %v674
        %v747 = vunpack.c.l.b16 %v675
        %v748 = vunpack.c.l.b16 %v676
        %v749 = vunpack.c.l.b16 %v677
        %v750 = vunpack.c.l.b16 %v678
        %v751 = vunpack.c.l.b16 %v679
        %v752 = vunpack.c.l.b16 %v680
        %v753 = vunpack.c.l.b16 %v681
        %v754 = vunpack.c.l.b16 %v682
        %v755 = vunpack.c.l.b16 %v683
        %v756 = vunpack.c.l.b16 %v684
        %v757 = vunpack.c.l.b16 %v685
        %v758 = vunpack.c.l.b16 %v686
        %v759 = vunpack.c.l.b16 %v687
        %v760 = vunpack.c.l.b16 %v688
        %v761 = vunpack.c.l.b16 %v689
        %v762 = vunpack.c.l.b16 %v690
        %v763 = vunpack.c.l.b16 %v691
        %v764 = vunpack.c.l.b16 %v692
        %v765 = vunpack.c.l.b16 %v693
        %v766 = vunpack.c.l.b16 %v694
        %v767 = vunpack.c.l.b16 %v695
        %v768 = vunpack.c.l.b16 %v696
        %v769 = vunpack.c.l.b16 %v697
        %v770 = vpack.c.b16 %v739, %v738
        %v771 = vpack.c.b16 %v741, %v740
        %v772 = vpack.c.b16 %v743, %v742
        %v773 = vpack.c.b16 %v745, %v744
        %v774 = vpack.c.b16 %v747, %v746
        %v775 = vpack.c.b16 %v749, %v748
        %v776 = vpack.c.b16 %v751, %v750
        %v777 = vpack.c.b16 %v753, %v752
        %v778 = vpack.c.b16 %v755, %v754
        %v779 = vpack.c.b16 %v757, %v756
        %v780 = vpack.c.b16 %v759, %v758
        %v781 = vpack.c.b16 %v761, %v760
        %v782 = vpack.c.b16 %v763, %v762
        %v783 = vpack.c.b16 %v765, %v764
        %v784 = vpack.c.b16 %v767, %v766
        %v785 = vpack.c.b16 %v769, %v768
        %v790 = vunpack.c.l.b16 %v698
        %v791 = vunpack.c.l.b16 %v699
        %v792 = vunpack.c.l.b16 %v700
        %v793 = vunpack.c.l.b16 %v701
        %v794 = vpack.c.b16 %v791, %v790
        %v795 = vpack.c.b16 %v793, %v792
        %v799 = vsel %vm521, %v770, 0
        %v802 = vsel %vm521, %v771, 0
        %v805 = vsel %vm521, %v772, 0
        %v808 = vsel %vm521, %v773, 0
        %v811 = vsel %vm521, %v774, 0
        %v814 = vsel %vm521, %v775, 0
        %v817 = vsel %vm521, %v776, 0
        %v820 = vsel %vm521, %v777, 0
        %v823 = vsel %vm521, %v778, 0
        %v826 = vsel %vm521, %v779, 0
        %v829 = vsel %vm521, %v780, 0
        %v832 = vsel %vm521, %v781, 0
        %v835 = vsel %vm521, %v782, 0
        %v838 = vsel %vm521, %v783, 0
        %v841 = vsel %vm521, %v784, 0
        %v844 = vsel %vm521, %v785, 0
        %846 = vmatpush.bf16.msra.mxu0 0
        %847 = vmatpush.bf16.msra.mxu0 0
        %848 = vmatpush.bf16.msra.mxu0 0
        %849 = vmatpush.bf16.msra.mxu0 0
        %850 = vmatpush.bf16.msra.mxu0 0
        %851 = vmatpush.bf16.msra.mxu0 0
        %852 = vmatpush.bf16.msra.mxu0 %v795
        %853 = vmatpush.bf16.msra.mxu0 %v794
        %854 = vmatmul.bf16.gmra.mxu0 %v799
        %v855 = vpop.f32.mrf.mxu0
        %v856 = vadd.f32 %v704, %v855
        %v857 = vpop.f32.mrf.mxu0
        %v858 = vadd.f32 %v704, %v857
        %859 = vmatmul.bf16.gmra.mxu0 %v802
        %v860 = vpop.f32.mrf.mxu0
        %v861 = vadd.f32 %v704, %v860
        %v862 = vpop.f32.mrf.mxu0
        %v863 = vadd.f32 %v704, %v862
        %864 = vmatmul.bf16.gmra.mxu0 %v805
        %v865 = vpop.f32.mrf.mxu0
        %v866 = vadd.f32 %v704, %v865
        %v867 = vpop.f32.mrf.mxu0
        %v868 = vadd.f32 %v704, %v867
        %869 = vmatmul.bf16.gmra.mxu0 %v808
        %v870 = vpop.f32.mrf.mxu0
        %v871 = vadd.f32 %v704, %v870
        %v872 = vpop.f32.mrf.mxu0
        %v873 = vadd.f32 %v704, %v872
        %874 = vmatmul.bf16.gmra.mxu0 %v811
        %v875 = vpop.f32.mrf.mxu0
        %v876 = vadd.f32 %v704, %v875
        %v877 = vpop.f32.mrf.mxu0
        %v878 = vadd.f32 %v704, %v877
        %879 = vmatmul.bf16.gmra.mxu0 %v814
        %v880 = vpop.f32.mrf.mxu0
        %v881 = vadd.f32 %v704, %v880
        %v882 = vpop.f32.mrf.mxu0
        %v883 = vadd.f32 %v704, %v882
        %884 = vmatmul.bf16.gmra.mxu0 %v817
        %v885 = vpop.f32.mrf.mxu0
        %v886 = vadd.f32 %v704, %v885
        %v887 = vpop.f32.mrf.mxu0
        %v888 = vadd.f32 %v704, %v887
        %889 = vmatmul.bf16.gmra.mxu0 %v820
        %v890 = vpop.f32.mrf.mxu0
        %v891 = vadd.f32 %v704, %v890
        %v892 = vpop.f32.mrf.mxu0
        %v893 = vadd.f32 %v704, %v892
        %894 = vmatmul.bf16.gmra.mxu0 %v823
        %v895 = vpop.f32.mrf.mxu0
        %v896 = vadd.f32 %v704, %v895
        %v897 = vpop.f32.mrf.mxu0
        %v898 = vadd.f32 %v704, %v897
        %899 = vmatmul.bf16.gmra.mxu0 %v826
        %v900 = vpop.f32.mrf.mxu0
        %v901 = vadd.f32 %v704, %v900
        %v902 = vpop.f32.mrf.mxu0
        %v903 = vadd.f32 %v704, %v902
        %904 = vmatmul.bf16.gmra.mxu0 %v829
        %v905 = vpop.f32.mrf.mxu0
        %v906 = vadd.f32 %v704, %v905
        %v907 = vpop.f32.mrf.mxu0
        %v908 = vadd.f32 %v704, %v907
        %909 = vmatmul.bf16.gmra.mxu0 %v832
        %v910 = vpop.f32.mrf.mxu0
        %v911 = vadd.f32 %v704, %v910
        %v912 = vpop.f32.mrf.mxu0
        %v913 = vadd.f32 %v704, %v912
        %914 = vmatmul.bf16.gmra.mxu0 %v835
        %v915 = vpop.f32.mrf.mxu0
        %v916 = vadd.f32 %v704, %v915
        %v917 = vpop.f32.mrf.mxu0
        %v918 = vadd.f32 %v704, %v917
        %919 = vmatmul.bf16.gmra.mxu0 %v838
        %v920 = vpop.f32.mrf.mxu0
        %v921 = vadd.f32 %v704, %v920
        %v922 = vpop.f32.mrf.mxu0
        %v923 = vadd.f32 %v704, %v922
        %924 = vmatmul.bf16.gmra.mxu0 %v841
        %v925 = vpop.f32.mrf.mxu0
        %v926 = vadd.f32 %v704, %v925
        %v927 = vpop.f32.mrf.mxu0
        %v928 = vadd.f32 %v704, %v927
        %929 = vmatmul.bf16.gmra.mxu0 %v844
        %v930 = vpop.f32.mrf.mxu0
        %v931 = vadd.f32 %v704, %v930
        %v932 = vpop.f32.mrf.mxu0
        %v933 = vadd.f32 %v704, %v932
        %934 = vdwg.mxu0
        %v935 = vmax.f32 %v856, 0.0
        %v936 = vmax.f32 %v858, 0.0
        %v937 = vmax.f32 %v861, 0.0
        %v938 = vmax.f32 %v863, 0.0
        %v939 = vmax.f32 %v866, 0.0
        %v940 = vmax.f32 %v868, 0.0
        %v941 = vmax.f32 %v871, 0.0
        %v942 = vmax.f32 %v873, 0.0
        %v943 = vmax.f32 %v876, 0.0
        %v944 = vmax.f32 %v878, 0.0
        %v945 = vmax.f32 %v881, 0.0
        %v946 = vmax.f32 %v883, 0.0
        %v947 = vmax.f32 %v886, 0.0
        %v948 = vmax.f32 %v888, 0.0
        %v949 = vmax.f32 %v891, 0.0
        %v950 = vmax.f32 %v893, 0.0
        %v951 = vmax.f32 %v896, 0.0
        %v952 = vmax.f32 %v898, 0.0
        %v953 = vmax.f32 %v901, 0.0
        %v954 = vmax.f32 %v903, 0.0
        %v955 = vmax.f32 %v906, 0.0
        %v956 = vmax.f32 %v908, 0.0
        %v957 = vmax.f32 %v911, 0.0
        %v958 = vmax.f32 %v913, 0.0
        %v959 = vmax.f32 %v916, 0.0
        %v960 = vmax.f32 %v918, 0.0
        %v961 = vmax.f32 %v921, 0.0
        %v962 = vmax.f32 %v923, 0.0
        %v963 = vmax.f32 %v926, 0.0
        %v964 = vmax.f32 %v928, 0.0
        %v965 = vmax.f32 %v931, 0.0
        %v966 = vmax.f32 %v933, 0.0
        %vm967 = vcmask 523264
        %v968 = vsel %vm967, %v935, -inf
        %v969 = vsel %vm967, %v936, -inf
        %v970 = vmax.f32 %v968, %v969
        %v971 = vrot.slane %v970, 4
        %v972 = vmax.f32 %v970, %v971
        %v973 = vrot.slane %v972, 2
        %v974 = vmax.f32 %v972, %v973
        %v975 = vrot.slane %v974, 1
        %v976 = vmax.f32 %v974, %v975
        %v977 = vsel %vm967, %v937, -inf
        %v978 = vsel %vm967, %v938, -inf
        %v979 = vmax.f32 %v977, %v978
        %v980 = vrot.slane %v979, 4
        %v981 = vmax.f32 %v979, %v980
        %v982 = vrot.slane %v981, 2
        %v983 = vmax.f32 %v981, %v982
        %v984 = vrot.slane %v983, 1
        %v985 = vmax.f32 %v983, %v984
        %v986 = vsel %vm967, %v939, -inf
        %v987 = vsel %vm967, %v940, -inf
        %v988 = vmax.f32 %v986, %v987
        %v989 = vrot.slane %v988, 4
        %v990 = vmax.f32 %v988, %v989
        %v991 = vrot.slane %v990, 2
        %v992 = vmax.f32 %v990, %v991
        %v993 = vrot.slane %v992, 1
        %v994 = vmax.f32 %v992, %v993
        %v995 = vsel %vm967, %v941, -inf
        %v996 = vsel %vm967, %v942, -inf
        %v997 = vmax.f32 %v995, %v996
        %v998 = vrot.slane %v997, 4
        %v999 = vmax.f32 %v997, %v998
        %v1000 = vrot.slane %v999, 2
        %v1001 = vmax.f32 %v999, %v1000
        %v1002 = vrot.slane %v1001, 1
        %v1003 = vmax.f32 %v1001, %v1002
        %v1004 = vsel %vm967, %v943, -inf
        %v1005 = vsel %vm967, %v944, -inf
        %v1006 = vmax.f32 %v1004, %v1005
        %v1007 = vrot.slane %v1006, 4
        %v1008 = vmax.f32 %v1006, %v1007
        %v1009 = vrot.slane %v1008, 2
        %v1010 = vmax.f32 %v1008, %v1009
        %v1011 = vrot.slane %v1010, 1
        %v1012 = vmax.f32 %v1010, %v1011
        %v1013 = vsel %vm967, %v945, -inf
        %v1014 = vsel %vm967, %v946, -inf
        %v1015 = vmax.f32 %v1013, %v1014
        %v1016 = vrot.slane %v1015, 4
        %v1017 = vmax.f32 %v1015, %v1016
        %v1018 = vrot.slane %v1017, 2
        %v1019 = vmax.f32 %v1017, %v1018
        %v1020 = vrot.slane %v1019, 1
        %v1021 = vmax.f32 %v1019, %v1020
        %v1022 = vsel %vm967, %v947, -inf
        %v1023 = vsel %vm967, %v948, -inf
        %v1024 = vmax.f32 %v1022, %v1023
        %v1025 = vrot.slane %v1024, 4
        %v1026 = vmax.f32 %v1024, %v1025
        %v1027 = vrot.slane %v1026, 2
        %v1028 = vmax.f32 %v1026, %v1027
        %v1029 = vrot.slane %v1028, 1
        %v1030 = vmax.f32 %v1028, %v1029
        %v1031 = vsel %vm967, %v949, -inf
        %v1032 = vsel %vm967, %v950, -inf
        %v1033 = vmax.f32 %v1031, %v1032
        %v1034 = vrot.slane %v1033, 4
        %v1035 = vmax.f32 %v1033, %v1034
        %v1036 = vrot.slane %v1035, 2
        %v1037 = vmax.f32 %v1035, %v1036
        %v1038 = vrot.slane %v1037, 1
        %v1039 = vmax.f32 %v1037, %v1038
        %v1040 = vsel %vm967, %v951, -inf
        %v1041 = vsel %vm967, %v952, -inf
        %v1042 = vmax.f32 %v1040, %v1041
        %v1043 = vrot.slane %v1042, 4
        %v1044 = vmax.f32 %v1042, %v1043
        %v1045 = vrot.slane %v1044, 2
        %v1046 = vmax.f32 %v1044, %v1045
        %v1047 = vrot.slane %v1046, 1
        %v1048 = vmax.f32 %v1046, %v1047
        %v1049 = vsel %vm967, %v953, -inf
        %v1050 = vsel %vm967, %v954, -inf
        %v1051 = vmax.f32 %v1049, %v1050
        %v1052 = vrot.slane %v1051, 4
        %v1053 = vmax.f32 %v1051, %v1052
        %v1054 = vrot.slane %v1053, 2
        %v1055 = vmax.f32 %v1053, %v1054
        %v1056 = vrot.slane %v1055, 1
        %v1057 = vmax.f32 %v1055, %v1056
        %v1058 = vsel %vm967, %v955, -inf
        %v1059 = vsel %vm967, %v956, -inf
        %v1060 = vmax.f32 %v1058, %v1059
        %v1061 = vrot.slane %v1060, 4
        %v1062 = vmax.f32 %v1060, %v1061
        %v1063 = vrot.slane %v1062, 2
        %v1064 = vmax.f32 %v1062, %v1063
        %v1065 = vrot.slane %v1064, 1
        %v1066 = vmax.f32 %v1064, %v1065
        %v1067 = vsel %vm967, %v957, -inf
        %v1068 = vsel %vm967, %v958, -inf
        %v1069 = vmax.f32 %v1067, %v1068
        %v1070 = vrot.slane %v1069, 4
        %v1071 = vmax.f32 %v1069, %v1070
        %v1072 = vrot.slane %v1071, 2
        %v1073 = vmax.f32 %v1071, %v1072
        %v1074 = vrot.slane %v1073, 1
        %v1075 = vmax.f32 %v1073, %v1074
        %v1076 = vsel %vm967, %v959, -inf
        %v1077 = vsel %vm967, %v960, -inf
        %v1078 = vmax.f32 %v1076, %v1077
        %v1079 = vrot.slane %v1078, 4
        %v1080 = vmax.f32 %v1078, %v1079
        %v1081 = vrot.slane %v1080, 2
        %v1082 = vmax.f32 %v1080, %v1081
        %v1083 = vrot.slane %v1082, 1
        %v1084 = vmax.f32 %v1082, %v1083
        %v1085 = vsel %vm967, %v961, -inf
        %v1086 = vsel %vm967, %v962, -inf
        %v1087 = vmax.f32 %v1085, %v1086
        %v1088 = vrot.slane %v1087, 4
        %v1089 = vmax.f32 %v1087, %v1088
        %v1090 = vrot.slane %v1089, 2
        %v1091 = vmax.f32 %v1089, %v1090
        %v1092 = vrot.slane %v1091, 1
        %v1093 = vmax.f32 %v1091, %v1092
        %v1094 = vsel %vm967, %v963, -inf
        %v1095 = vsel %vm967, %v964, -inf
        %v1096 = vmax.f32 %v1094, %v1095
        %v1097 = vrot.slane %v1096, 4
        %v1098 = vmax.f32 %v1096, %v1097
        %v1099 = vrot.slane %v1098, 2
        %v1100 = vmax.f32 %v1098, %v1099
        %v1101 = vrot.slane %v1100, 1
        %v1102 = vmax.f32 %v1100, %v1101
        %v1103 = vsel %vm967, %v965, -inf
        %v1104 = vsel %vm967, %v966, -inf
        %v1105 = vmax.f32 %v1103, %v1104
        %v1106 = vrot.slane %v1105, 4
        %v1107 = vmax.f32 %v1105, %v1106
        %v1108 = vrot.slane %v1107, 2
        %v1109 = vmax.f32 %v1107, %v1108
        %v1110 = vrot.slane %v1109, 1
        %v1111 = vmax.f32 %v1109, %v1110
        %vm1128 = vcmask 1041409
        %v1129 = vsel %vm1128, %v539, %v530
        %vm1130 = vcmask 1042434
        %v1131 = vsel %vm1130, %v548, %v1129
        %vm1132 = vcmask 1043459
        %v1133 = vsel %vm1132, %v557, %v1131
        %vm1134 = vcmask 1044484
        %v1135 = vsel %vm1134, %v566, %v1133
        %vm1136 = vcmask 1045509
        %v1137 = vsel %vm1136, %v575, %v1135
        %vm1138 = vcmask 1046534
        %v1139 = vsel %vm1138, %v584, %v1137
        %vm1140 = vcmask 1047559
        %v1141 = vsel %vm1140, %v593, %v1139
        %v1142 = vsel %vm1128, %v611, %v602
        %v1143 = vsel %vm1130, %v620, %v1142
        %v1144 = vsel %vm1132, %v629, %v1143
        %v1145 = vsel %vm1134, %v638, %v1144
        %v1146 = vsel %vm1136, %v647, %v1145
        %v1147 = vsel %vm1138, %v656, %v1146
        %v1148 = vsel %vm1140, %v665, %v1147
        %v1167 = vsel %vm1128, %v985, %v976
        %v1168 = vsel %vm1130, %v994, %v1167
        %v1169 = vsel %vm1132, %v1003, %v1168
        %v1170 = vsel %vm1134, %v1012, %v1169
        %v1171 = vsel %vm1136, %v1021, %v1170
        %v1172 = vsel %vm1138, %v1030, %v1171
        %v1173 = vsel %vm1140, %v1039, %v1172
        %v1174 = vsel %vm1128, %v1057, %v1048
        %v1175 = vsel %vm1130, %v1066, %v1174
        %v1176 = vsel %vm1132, %v1075, %v1175
        %v1177 = vsel %vm1134, %v1084, %v1176
        %v1178 = vsel %vm1136, %v1093, %v1177
        %v1179 = vsel %vm1138, %v1102, %v1178
        %v1180 = vsel %vm1140, %v1111, %v1179
        %1181 = vrot.lane.b32.xlu0 %v1173, 32
        %v1182 = vpop.permute.xlu0 %1181
        %1183 = vrot.lane.b32.xlu0 %v1180, 32
        %v1184 = vpop.permute.xlu0 %1183
        %v1187 = vsel %vm521, %v1141, %v1182
        %v1188 = vsel %vm521, %v1148, %v1184
        %vm1189 = vcmask 785408
        %v1190 = vsel %vm1189, %v1187, 0.0
        %v1191 = vsel %vm1189, %v1188, 0.0
        %1192 = vst [vmem:[%s220] sm:$0xff] %v1190
        %1193 = vst [vmem:[%s220 + $0x8] sm:$0xff] %v1191
        %s1194 = sand.u32 %s137, 1
        %s1195 = scalar_lea.sflag [#allocation3], %s1194
        %s1196 = sand.u32 %s137, 1
        %s1197 = smul.addr %s1196, 16
        %s1198 = scalar_lea.vmem [#allocation2], %s1197
        // Predicated region
        $region41: #{tpu_custom_call.1} parent=39 // pred_check
          %p1199 = pneg %p147
        $region42: #{tpu_custom_call.1} parent=39 // pred_check_branch
          %1201 = sbr.rel (%p1199) target = $region44
        $region43: #{tpu_custom_call.1} parent=39 // pred_region
          %s1202 = smul.u32 2, %s19
          %1204 = vsyncadd %s1195, 0
          %s1205 = smul.addr %s1202, 8
          %s1206 = scalar_lea.hbm %s5, %s1205
          %s1207 = sshll.u32 %s1198, 4
          %s1208 = int_to_ptr.vmem [resolvable:$true] %s1207
          %s1209 = sshll.u32 %s1206, 4
          %s1210 = int_to_ptr.hbm [resolvable:$true] %s1209
          %1215 = dma.vmem_to_hbm [thread:$0]  %s1208, 256, %s1210, %s1195, 128, 128, 8
        $region44: #{tpu_custom_call.1} parent=39 // pred_fallthru
          _
      $region40: #{tpu_custom_call.1} parent=5 // pred_fallthru
        _
      %p1216 = scmp.le.s32.totalorder 2, %s14
      // Predicated region
      $region45: #{tpu_custom_call.1} parent=5 // pred_check
        %p1217 = pneg %p1216
      $region46: #{tpu_custom_call.1} parent=5 // pred_check_branch
        %1219 = sbr.rel (%p1217) target = $region48
      $region47: #{tpu_custom_call.1} parent=5 // pred_region
        %s1220 = ssub.s32 %s14, 2
        // Predicated region
        $region49: #{tpu_custom_call.1} parent=47 // pred_check
          %p1221 = pneg %p153
        $region50: #{tpu_custom_call.1} parent=47 // pred_check_branch
          %1223 = sbr.rel (%p1221) target = $region52
        $region51: #{tpu_custom_call.1} parent=47 // pred_region
          %s1224 = sand.u32 %s138, 1
          %s1225 = scalar_lea.sflag [#allocation3], %s1224
          %s1226 = sand.u32 %s138, 1
          %s1227 = smul.addr %s1226, 16
          %s1228 = scalar_lea.vmem [#allocation2], %s1227
          %1230 = dma.done %s1225, 256
        $region52: #{tpu_custom_call.1} parent=47 // pred_fallthru
          _
      $region48: #{tpu_custom_call.1} parent=5 // pred_fallthru
        _
    $region6: #{tpu_custom_call.1} parent=1 // loop_footer
      %s18 = sadd.s32 1, %s14
    $region7: #{tpu_custom_call.1} parent=1 // loop_footer_branch
      %13 = sbr.rel target = $region3
    $region8: #{tpu_custom_call.1} parent=1 // loop_exit
      _
    %1231 = vsyncpa [#allocation3], 1
    %s1232 = scalar_lea.sflag [#allocation3], 1
    %1233 = vsyncpa %s1232, 1

</llo_original>
